<compile_context>
chip_gen: v7x
topology: tpu7x:2x2x1
jax: 0.10.0
libtpu: 0.0.40
codegen_flags: <defaults>
</compile_context>

<pallas_src>
import functools

import jax
import jax.numpy as jnp
from jax import lax
from jax.experimental import pallas as pl
from jax.experimental.pallas import tpu as pltpu


def _round_up(n, m):
    return ((n + m - 1) // m) * m


# ---------------------------------------------------------------------------
# Path A kernel: VMEM-resident table, one-hot MXU gather (small/moderate V).
# ---------------------------------------------------------------------------
def _lookup_add_onehot_kernel(x_ref, y_ref, w_ref, o_ref, *, scale, vocab):
    # x_ref: (TM, D) activations; y_ref: (TM, 1) int32 ids;
    # w_ref: (V, D) whole table, single-buffered in VMEM; o_ref: (TM, D).
    ids = y_ref[...]                                           # (TM, 1)
    tm = ids.shape[0]
    col = lax.broadcasted_iota(jnp.int32, (tm, vocab), 1)      # (TM, V)
    # One-hot built in the table dtype (exact for 0/1; bf16 tables take the
    # fast MXU path).  At small V the kernel is HBM-bound, so the iota/compare
    # and the scale multiply are free filler under the memory bottleneck.
    onehot = (ids == col).astype(w_ref.dtype)                  # (TM, V)
    gathered = jnp.dot(onehot, w_ref[...],
                       preferred_element_type=jnp.float32)     # exact gather
    o_ref[...] = (x_ref[...] + scale * gathered).astype(o_ref.dtype)


# ---------------------------------------------------------------------------
# Path B kernel: HBM table + windowed per-row DMA gather (large V).
# ---------------------------------------------------------------------------
_GATHER_WINDOW = 8  # in-flight row DMAs


def _lookup_add_gather_kernel(ids_ref, x_ref, w_hbm, o_ref, rows, sems, *,
                              scale, n_tokens, tm):
    # ids_ref: (N,) int32 in SMEM (scalar prefetch); x_ref/o_ref: (TM, D);
    # w_hbm: (V, D) table left in HBM; rows: (TM, D) VMEM scratch.
    base = pl.program_id(0) * tm

    def token(t):
        # Clamp so the ragged last tile never indexes past the real ids; the
        # duplicate gathered rows land in output rows Pallas masks off anyway.
        return jnp.minimum(base + t, n_tokens - 1)

    def start(t):
        row = ids_ref[token(t)]
        pltpu.make_async_copy(w_hbm.at[pl.ds(row, 1)],
                              rows.at[pl.ds(t, 1)],
                              sems.at[t % _GATHER_WINDOW]).start()

    def wait(t):
        # Reconstructed descriptor: only transfer size + semaphore matter.
        pltpu.make_async_copy(w_hbm.at[pl.ds(0, 1)],
                              rows.at[pl.ds(0, 1)],
                              sems.at[t % _GATHER_WINDOW]).wait()

    # Prime the in-flight window, steady-state wait(t)/start(t+W), then drain.
    for t in range(min(_GATHER_WINDOW, tm)):       # static, small unroll
        start(t)

    if tm > _GATHER_WINDOW:
        @pl.loop(0, tm - _GATHER_WINDOW)
        def _(t):
            wait(t)
            start(t + _GATHER_WINDOW)

    @pl.loop(max(tm - _GATHER_WINDOW, 0), tm)
    def _(t):
        wait(t)

    o_ref[...] = (x_ref[...]
                  + scale * rows[...].astype(jnp.float32)).astype(o_ref.dtype)


def _vmem_cap_bytes():
    # Generation-aware VMEM ceiling: ~115 MiB on v5e/v6e (128 MiB physical),
    # ~57 MiB on v7x (64 MiB physical per TensorCore); conservative fallback.
    try:
        cap = int(pltpu.get_tpu_info().vmem_capacity_bytes)
    except Exception:
        cap = 64 * 1024 * 1024
    return max(16 * 1024 * 1024, int(cap * 0.9))


def lookup_forward(x, y, w_table, lookup_scale, *, tm=None,
                   max_onehot_vocab=1024):
    """x: (B, S, D), y: (B, S) int ids, w_table: (V, D) unscaled table."""
    B, S, D = x.shape
    V, Dw = w_table.shape
    assert Dw == D, "embedding dim mismatch"
    N = B * S
    scale = float(lookup_scale)  # config constant in the original module
    # TODO(synk): if lookup_scale ever needs to be a traced runtime value,
    # pass it as a (1, 1) SMEM input instead of baking it in at trace time.

    x_itemsize = jnp.dtype(x.dtype).itemsize
    w_itemsize = jnp.dtype(w_table.dtype).itemsize
    sublane = max(8, 32 // x_itemsize)             # 8 for f32, 16 for bf16

    # D-aware token tile: ~2 MiB of x+out traffic per grid step.
    if tm is None:
        tm = (2 * 1024 * 1024) // max(1, 2 * D * x_itemsize)
        tm = max(1024, min(4096, tm))
    tm = _round_up(tm, sublane)
    if N <= tm:
        # Block must not exceed the array dim; full dim is allowed if < sublane.
        tm_eff = N if N < sublane else (N // sublane) * sublane
    else:
        tm_eff = tm
        # Megacore (v7x): if >=4 grid steps still carry >=1 MiB of x+out
        # traffic each, prefer that so both TensorCores get work.
        min_tile = max(sublane,
                       _round_up((1 << 20) // max(1, 2 * D * x_itemsize),
                                 sublane))
        cand = min(tm_eff, _round_up(pl.cdiv(N, 4), sublane))
        if N < 4 * tm_eff and cand >= min_tile:
            tm_eff = cand
    grid = (pl.cdiv(N, tm_eff),)                   # ragged last block masked

    x_flat = x.reshape(N, D)
    y_flat = y.reshape(N).astype(jnp.int32)

    vmem_cap = _vmem_cap_bytes()

    # One-hot path VMEM estimate: single-buffered table + double-buffered
    # streamed tiles + (TM, V) one-hot intermediate + headroom.
    onehot_needed = (V * D * w_itemsize
                     + 4 * tm_eff * D * x_itemsize + 4 * tm_eff * 4
                     + tm_eff * max(V, 128) * 4 + 2 * tm_eff * D * 4
                     + (2 << 20))
    use_onehot = (V <= max_onehot_vocab) and (onehot_needed <= vmem_cap)

    if use_onehot:
        kernel = functools.partial(_lookup_add_onehot_kernel,
                                   scale=scale, vocab=V)
        out_flat = pl.pallas_call(
            kernel,
            out_shape=jax.ShapeDtypeStruct((N, D), x.dtype),
            grid_spec=pltpu.PrefetchScalarGridSpec(
                num_scalar_prefetch=0,
                grid=grid,
                in_specs=[
                    pl.BlockSpec((tm_eff, D), lambda i: (i, 0)),   # x tile
                    pl.BlockSpec((tm_eff, 1), lambda i: (i, 0)),   # token ids
                    # Whole table resident in VMEM, single-buffered.
                    pl.BlockSpec(memory_space=pltpu.MemorySpace.VMEM),
                ],
                out_specs=pl.BlockSpec((tm_eff, D), lambda i: (i, 0)),
            ),
            compiler_params=pltpu.CompilerParams(
                dimension_semantics=("parallel",),
                vmem_limit_bytes=int(min(vmem_cap,
                                         max(onehot_needed, 16 << 20))),
            ),
        )(x_flat, y_flat.reshape(N, 1), w_table)
    else:
        # Large-V path: table stays in HBM; ids scalar-prefetched into SMEM.
        gather_needed = (4 * tm_eff * D * x_itemsize
                         + 2 * tm_eff * D * w_itemsize + (2 << 20))
        kernel = functools.partial(_lookup_add_gather_kernel,
                                   scale=scale, n_tokens=N, tm=tm_eff)
        out_flat = pl.pallas_call(
            kernel,
            out_shape=jax.ShapeDtypeStruct((N, D), x.dtype),
            grid_spec=pltpu.PrefetchScalarGridSpec(
                num_scalar_prefetch=1,
                grid=grid,
                in_specs=[
                    pl.BlockSpec((tm_eff, D), lambda i, ids: (i, 0)),  # x tile
                    pl.BlockSpec(memory_space=pl.ANY),                 # table
                ],
                out_specs=pl.BlockSpec((tm_eff, D), lambda i, ids: (i, 0)),
                scratch_shapes=[
                    pltpu.VMEM((tm_eff, D), w_table.dtype),
                    pltpu.SemaphoreType.DMA((_GATHER_WINDOW,)),
                ],
            ),
            compiler_params=pltpu.CompilerParams(
                dimension_semantics=("parallel",),
                vmem_limit_bytes=int(min(vmem_cap,
                                         max(gather_needed, 16 << 20))),
            ),
        )(y_flat, x_flat, w_table)

    return out_flat.reshape(B, S, D)


if __name__ == "__main__":
    B, S, D = 2, 8, 128
    lookup_scale = 0.5
    key = jax.random.PRNGKey(0)
    kx, ky, kw, kx2, ky2, kw2 = jax.random.split(key, 6)

    # Path A: small vocab -> VMEM-resident one-hot MXU gather.
    V_small = 32
    x = jax.random.normal(kx, (B, S, D), dtype=jnp.float32)
    y = jax.random.randint(ky, (B, S), 0, V_small, dtype=jnp.int32)
    w = jax.random.normal(kw, (V_small, D), dtype=jnp.float32)
    out = jax.block_until_ready(lookup_forward(x, y, w, lookup_scale))
    ref = x + lookup_scale * w[y]
    assert out.shape == ref.shape
    assert jnp.allclose(out, ref, atol=1e-5, rtol=1e-5)

    # Path B: "large" vocab (forced via threshold) -> HBM table + DMA gather.
    V_large = 4096
    x2 = jax.random.normal(kx2, (B, S, D), dtype=jnp.float32)
    y2 = jax.random.randint(ky2, (B, S), 0, V_large, dtype=jnp.int32)
    w2 = jax.random.normal(kw2, (V_large, D), dtype=jnp.float32)
    out2 = jax.block_until_ready(
        lookup_forward(x2, y2, w2, lookup_scale, max_onehot_vocab=256))
    ref2 = x2 + lookup_scale * w2[y2]
    assert out2.shape == ref2.shape
    assert jnp.allclose(out2, ref2, atol=1e-5, rtol=1e-5)

    print("KERNEL_OK")
</pallas_src>

<mosaic_0001>
module attributes {stable_mosaic.version = 11 : i64} {
  func.func @_lookup_add_onehot_kernel(%arg0: i32, %arg1: memref<16x128xf32, #tpu.memory_space<vmem>>, %arg2: memref<16x1xi32, #tpu.memory_space<vmem>>, %arg3: memref<32x128xf32, #tpu.memory_space<vmem>>, %arg4: memref<16x128xf32, #tpu.memory_space<vmem>>) attributes {dimension_semantics = [#tpu.dimension_semantics<parallel>], iteration_bounds = array<i64: 1>, scalar_prefetch = 0 : i64, scratch_operands = 0 : i64, tpu.core_type = #tpu.core_type<tc>, window_params = [{transform_indices = @transform_0, window_bounds = array<i64: 16, 128>}, {transform_indices = @transform_1, window_bounds = array<i64: 16, 1>}, {pipeline_mode = #tpu.pipeline_mode<synchronous>, transform_indices = @transform_2, window_bounds = array<i64: 32, 128>}, {transform_indices = @transform_3, window_bounds = array<i64: 16, 128>}]} {
    %c0 = arith.constant 0 : index
    %c0_0 = arith.constant 0 : index
    %0 = vector.load %arg2[%c0, %c0_0] : memref<16x1xi32, #tpu.memory_space<vmem>>, vector<16x1xi32>
    %1 = tpu.iota {dimensions = array<i32: 1>} : vector<16x32xi32>
    %2 = vector.broadcast %0 : vector<16x1xi32> to vector<16x32xi32>
    %3 = arith.cmpi eq, %2, %1 : vector<16x32xi32>
    %4 = arith.extui %3 : vector<16x32xi1> to vector<16x32xi32>
    %5 = arith.sitofp %4 : vector<16x32xi32> to vector<16x32xf32>
    %c0_1 = arith.constant 0 : index
    %c0_2 = arith.constant 0 : index
    %6 = vector.load %arg3[%c0_1, %c0_2] : memref<32x128xf32, #tpu.memory_space<vmem>>, vector<32x128xf32>
    %cst = arith.constant dense<0.000000e+00> : vector<16x128xf32>
    %7 = tpu.matmul %5, %6, %cst {dimension_numbers = #tpu.dot_dimension_numbers<[1], [0], [0], [1], [0, 0, 1, 1], [], []>} : vector<16x32xf32>, vector<32x128xf32>, vector<16x128xf32> -> vector<16x128xf32>
    %c0_3 = arith.constant 0 : index
    %c0_4 = arith.constant 0 : index
    %8 = vector.load %arg1[%c0_3, %c0_4] : memref<16x128xf32, #tpu.memory_space<vmem>>, vector<16x128xf32>
    %cst_5 = arith.constant 5.000000e-01 : f32
    %9 = vector.broadcast %cst_5 : f32 to vector<16x128xf32>
    %10 = arith.mulf %9, %7 : vector<16x128xf32>
    %11 = arith.addf %8, %10 : vector<16x128xf32>
    %c0_6 = arith.constant 0 : index
    %c0_7 = arith.constant 0 : index
    %12 = vector.load %arg4[%c0_6, %c0_7] : memref<16x128xf32, #tpu.memory_space<vmem>>, vector<16x128xf32>
    tpu.vector_store %arg4[%c0_6, %c0_7], %11 {strides = array<i32>} : memref<16x128xf32, #tpu.memory_space<vmem>>, vector<16x128xf32>,
    return
  }
  func.func @transform_0(%arg0: i32) -> (i32, i32) {
    %c0_i32 = arith.constant 0 : i32
    %c0_i32_0 = arith.constant 0 : i32
    return %arg0, %c0_i32 : i32, i32
  }
  func.func @transform_1(%arg0: i32) -> (i32, i32) {
    %c0_i32 = arith.constant 0 : i32
    %c0_i32_0 = arith.constant 0 : i32
    return %arg0, %c0_i32 : i32, i32
  }
  func.func @transform_2(%arg0: i32) -> (i32, i32) {
    %c0_i32 = arith.constant 0 : i32
    %c0_i32_0 = arith.constant 0 : i32
    %c0_i32_1 = arith.constant 0 : i32
    return %c0_i32, %c0_i32_0 : i32, i32
  }
  func.func @transform_3(%arg0: i32) -> (i32, i32) {
    %c0_i32 = arith.constant 0 : i32
    %c0_i32_0 = arith.constant 0 : i32
    return %arg0, %c0_i32 : i32, i32
  }
}

</mosaic_0001>

<llo_original>
// kernel: tpu_custom_call.1
$region0: #{tpu_custom_call.1}
  #allocation0 [shape = 'u32[]', space=smem, size = 0x4, offset = 0x4, fixed_abs, tag = 'smem constant byte address 0x4 - core index']
  #allocation1 [shape = 'u32[144,128]{1,0:T(1,128)}', space=vmem, size = 0x12000, scoped, tag = 'internal scratch']
  %s0 = inlined_call_operand.vmem [shape: f32[16,128], index: 0, kind: input, shape index: {}]
  %s1 = inlined_call_operand.vmem [shape: s32[16,1], index: 1, kind: input, shape index: {}]
  %s2 = inlined_call_operand.hbm [shape: f32[32,128], index: 2, kind: input, shape index: {}]
  %s3 = inlined_call_operand.hbm [shape: f32[16,128], index: 3, kind: output, shape index: {}]
  %s4 = sld [smem:[#allocation0]]
  $region26: #{tpu_custom_call.1} parent=0
    _
  %s6 = ssub.s32 1, %s4
  %s7 = scalar_select 0, %s6, %s4
  $region1: #{tpu_custom_call.1} parent=0
    #allocation2 [shape = 'u8[16384]{0}', space=vmem, size = 0x4000, scoped, tag = 'input window, operand 2, single buffered']
    #allocation3 [shape = 's32[1]{0}', space=sflag, size = 0x4, scoped, tag = 'scoped memory for tpu_custom_call.1']
    #allocation4 [shape = 's32[1]{0}', space=sflag, size = 0x4, scoped, tag = 'scoped memory for tpu_custom_call.1']
    #allocation5 [shape = 'u8[8192]{0}', space=vmem, size = 0x2000, scoped, tag = 'output window, operand 0, single buffered']
    %8 = vsyncpa [#allocation3], 0
    %9 = vsyncpa [#allocation4], 0
    // Predicated region
    $region2: #{tpu_custom_call.1} parent=1 // pred_check
      _
    $region3: #{tpu_custom_call.1} parent=1 // pred_check_branch
      %11 = sbr.rel (0) target = $region5
    $region4: #{tpu_custom_call.1} parent=1 // pred_region
      _
    $region5: #{tpu_custom_call.1} parent=1 // pred_fallthru
      _
    // Predicated region
    $region6: #{tpu_custom_call.1} parent=1 // pred_check
      _
    $region7: #{tpu_custom_call.1} parent=1 // pred_check_branch
      %13 = sbr.rel (0) target = $region9
    $region8: #{tpu_custom_call.1} parent=1 // pred_region
      _
    $region9: #{tpu_custom_call.1} parent=1 // pred_fallthru
      _
    // Predicated region
    $region10: #{tpu_custom_call.1} parent=1 // pred_check
      _
    $region11: #{tpu_custom_call.1} parent=1 // pred_check_branch
      %15 = sbr.rel (0) target = $region13
    $region12: #{tpu_custom_call.1} parent=1 // pred_region
      %s17 = ssub.s32 512, 512
      %18 = vsyncadd [#allocation3], %s17
      %s19 = sshll.u32 [#allocation2], 4
      %s20 = int_to_ptr.vmem [resolvable:$true] %s19
      %25 = dma.hbm_to_vmem [thread:$0]  %s2, 512, %s20, [#allocation3], 128, 128, 8
    $region13: #{tpu_custom_call.1} parent=1 // pred_fallthru
      _
    // Predicated region
    $region14: #{tpu_custom_call.1} parent=1 // pred_check
      _
    $region15: #{tpu_custom_call.1} parent=1 // pred_check_branch
      %27 = sbr.rel (0) target = $region17
    $region16: #{tpu_custom_call.1} parent=1 // pred_region
      %28 = dma.done [#allocation3], 512
    $region17: #{tpu_custom_call.1} parent=1 // pred_fallthru
      _
    %v29 = vld [vmem:[%s1] sm:$0xff]
    %v30 = vld [vmem:[%s1 + $0x8] sm:$0xff]
    %v31 = vlaneseq
    %v32 = vand.u32 %v31, 127
    %33 = vset.pattern.permute.xlu0 0
    %34 = vperm.xlu0 %33, %v29
    %v35 = vpop.permute.xlu0 %34
    %36 = vset.pattern.permute.xlu0 0
    %37 = vperm.xlu0 %36, %v30
    %v38 = vpop.permute.xlu0 %37
    %vm39 = vcmp.eq.s32.totalorder %v35, %v32
    %vm40 = vcmp.eq.s32.totalorder %v38, %v32
    %v41 = vsel %vm39, 1, 0
    %v42 = vsel %vm40, 1, 0
    %v43 = vcvt.s32.f32 %v41
    %v44 = vcvt.s32.f32 %v42
    %v45 = vld [vmem:[#allocation2] sm:$0xff]
    %v46 = vld [vmem:[#allocation2 + $0x8] sm:$0xff]
    %v47 = vld [vmem:[#allocation2 + $0x10] sm:$0xff]
    %v48 = vld [vmem:[#allocation2 + $0x18] sm:$0xff]
    %vm49 = vcmask 261120
    %v51 = vsel %vm49, %v43, 0
    %v54 = vsel %vm49, %v44, 0
    %56 = vmatprep.subr.mxu0 0.0
    %57 = vmatpush1.msra.mxu0 %v45
    %58 = vmatprep.subr.mxu0 0.0
    %59 = vmatpush1.msra.mxu0 %v46
    %60 = vmatprep.subr.mxu0 0.0
    %61 = vmatpush1.msra.mxu0 %v47
    %62 = vmatprep.subr.mxu0 0.0
    %63 = vmatpush1.msra.mxu0 %v48
    %64 = vmatprep.subr.mxu0 0.0
    %65 = vmatpush1.msra.mxu0 0.0
    %66 = vmatprep.subr.mxu0 0.0
    %67 = vmatpush1.msra.mxu0 0.0
    %68 = vmatprep.subr.mxu0 0.0
    %69 = vmatpush1.msra.mxu0 0.0
    %70 = vmatprep.subr.mxu0 0.0
    %71 = vmatpush1.msra.mxu0 0.0
    %72 = vmatprep.subr.mxu0 0.0
    %73 = vmatpush1.msra.mxu0 0.0
    %74 = vmatprep.subr.mxu0 0.0
    %75 = vmatpush1.msra.mxu0 0.0
    %76 = vmatprep.subr.mxu0 0.0
    %77 = vmatpush1.msra.mxu0 0.0
    %78 = vmatprep.subr.mxu0 0.0
    %79 = vmatpush1.msra.mxu0 0.0
    %80 = vmatprep.subr.mxu0 0.0
    %81 = vmatpush1.msra.mxu0 0.0
    %82 = vmatprep.subr.mxu0 0.0
    %83 = vmatpush1.msra.mxu0 0.0
    %84 = vmatprep.subr.mxu0 0.0
    %85 = vmatpush1.msra.mxu0 0.0
    %86 = vmatprep.subr.mxu0 0.0
    %87 = vmatpush1.msra.mxu0 0.0
    %88 = vmatprep.subr.mxu0 0.0
    %89 = vmatpush1.msra.mxu0 0.0
    %90 = vmatprep.subr.mxu0 0.0
    %91 = vmatpush1.msra.mxu0 0.0
    %92 = vmatprep.subr.mxu0 0.0
    %93 = vmatpush1.msra.mxu0 0.0
    %94 = vmatprep.subr.mxu0 0.0
    %95 = vmatpush1.msra.mxu0 0.0
    %96 = vmatprep.subr.mxu0 0.0
    %97 = vmatpush1.msra.mxu0 0.0
    %98 = vmatprep.subr.mxu0 0.0
    %99 = vmatpush1.msra.mxu0 0.0
    %100 = vmatprep.subr.mxu0 0.0
    %101 = vmatpush1.msra.mxu0 0.0
    %102 = vmatprep.subr.mxu0 0.0
    %103 = vmatpush1.msra.mxu0 0.0
    %104 = vmatprep.subr.mxu0 0.0
    %105 = vmatpush1.msra.mxu0 0.0
    %106 = vmatprep.subr.mxu0 0.0
    %107 = vmatpush1.msra.mxu0 0.0
    %108 = vmatprep.subr.mxu0 0.0
    %109 = vmatpush1.msra.mxu0 0.0
    %110 = vmatprep.subr.mxu0 0.0
    %111 = vmatpush1.msra.mxu0 0.0
    %112 = vmatprep.subr.mxu0 0.0
    %113 = vmatpush1.msra.mxu0 0.0
    %114 = vmatprep.subr.mxu0 0.0
    %115 = vmatpush1.msra.mxu0 0.0
    %116 = vmatprep.subr.mxu0 0.0
    %117 = vmatpush1.msra.mxu0 0.0
    %118 = vmatprep.subr.mxu0 0.0
    %119 = vmatpush1.msra.mxu0 0.0
    %120 = vmatprep.mubr.f32.mxu0 0.0
    %121 = vmatmul.mubr.f32.gmra.mrb[0].mxu0 %v51
    %v122 = vpop.f32.mrb[0].mxu0
    %v123 = vadd.f32 0.0, %v122
    %v124 = vpop.f32.mrb[0].mxu0
    %125 = vmatprep.mubr.f32.mxu0 0.0
    %126 = vmatmul.mubr.f32.gmra.mrb[0].mxu0 %v54
    %v127 = vpop.f32.mrb[0].mxu0
    %v128 = vadd.f32 0.0, %v127
    %v129 = vpop.f32.mrb[0].mxu0
    %130 = vdwg.mxu0
    %v131 = vld [vmem:[%s0] sm:$0xff]
    %v132 = vld [vmem:[%s0 + $0x8] sm:$0xff]
    %v133 = vmul.f32 %v123, 0.5
    %v134 = vmul.f32 %v128, 0.5
    %v135 = vadd.f32 %v131, %v133
    %v136 = vadd.f32 %v132, %v134
    %137 = vst [vmem:[#allocation5] sm:$0xff] %v135
    %138 = vst [vmem:[#allocation5 + $0x8] sm:$0xff] %v136
    // Predicated region
    $region18: #{tpu_custom_call.1} parent=1 // pred_check
      _
    $region19: #{tpu_custom_call.1} parent=1 // pred_check_branch
      %140 = sbr.rel (0) target = $region21
    $region20: #{tpu_custom_call.1} parent=1 // pred_region
      %s142 = ssub.s32 256, 256
      %143 = vsyncadd [#allocation4], %s142
      %s144 = sshll.u32 [#allocation5], 4
      %s145 = int_to_ptr.vmem [resolvable:$true] %s144
      %150 = dma.vmem_to_hbm [thread:$0]  %s145, 256, %s3, [#allocation4], 128, 128, 8
    $region21: #{tpu_custom_call.1} parent=1 // pred_fallthru
      _
    // Predicated region
    $region22: #{tpu_custom_call.1} parent=1 // pred_check
      _
    $region23: #{tpu_custom_call.1} parent=1 // pred_check_branch
      %152 = sbr.rel (0) target = $region25
    $region24: #{tpu_custom_call.1} parent=1 // pred_region
      %153 = dma.done [#allocation4], 256
    $region25: #{tpu_custom_call.1} parent=1 // pred_fallthru
      _
    %154 = vsyncpa [#allocation3], 1
    %155 = vsyncpa [#allocation4], 1

</llo_original>
